<compile_context>
chip_gen: v6e
topology: v6e:2x2x1
jax: 0.10.0
libtpu: 0.0.40
codegen_flags: <defaults>
</compile_context>

<pallas_src>
import functools

import jax
import jax.numpy as jnp
from jax.experimental import pallas as pl
from jax.experimental.pallas import tpu as pltpu

_LANES = 128
_SUBLANES = 8
_ROW_ALIGN = 32      # int8 tile rule (32, 128); also covers f32 (8,128) / bf16 (16,128)
_TM_MAX = 2048       # rows per grid block; ~1 MiB f32 pred tile


def _round_up(x, m):
    return (x + m - 1) // m * m


def _focal_loss_kernel(pred_ref, target_ref, out_ref, *, gamma, alpha):
    """One (tm, 128) tile -> (8, 128) per-block partial sums (no cross-step state)."""
    x = pred_ref[...].astype(jnp.float32)
    t = target_ref[...].astype(jnp.float32)

    # Share exp(-|x|) between sigmoid and the stable BCE tail:
    # ~3 EUP ops/element total (exp, reciprocal, log1p).
    e = jnp.exp(-jnp.abs(x))
    inv = 1.0 / (1.0 + e)
    sig = jnp.where(x >= 0.0, inv, e * inv)            # == sigmoid(x)

    pt = jnp.where(t == 1.0, 1.0 - sig, sig)

    g = float(gamma)
    if g == 2.0:
        pt_pow = pt * pt                               # VPU multiply, no EUP
    elif g == 1.0:
        pt_pow = pt
    elif g == 0.0:
        pt_pow = jnp.ones_like(pt)
    else:
        pt_pow = jnp.exp(g * jnp.log(pt))              # generic power (pt in [0, 1))

    focal_w = (alpha * t + (1.0 - alpha) * (1.0 - t)) * pt_pow

    # Numerically-stable BCE with logits: max(x, 0) - x*t + log1p(exp(-|x|)).
    bce = jnp.maximum(x, 0.0) - x * t + jnp.log1p(e)

    loss = bce * focal_w                               # padded (x=-100, t=0) -> exactly 0

    # Vector partial sums: fold sublane groups with pure VPU adds and write a
    # lane-dense (8, 128) slab; the tiny final reduce happens outside the kernel.
    tm = loss.shape[0]
    out_ref[...] = jnp.sum(loss.reshape(tm // _SUBLANES, _SUBLANES, _LANES), axis=0)


def focal_loss(pred, target, *, gamma=2.0, alpha=0.25, reduction="mean",
               loss_weight=1.0):
    """JAX/Pallas equivalent of FocalLoss.forward (reduction='mean'|'sum')."""
    # Match PyTorch: unsqueeze target at dim 1 when dims differ, then broadcast.
    if pred.ndim != target.ndim:
        target = jnp.expand_dims(target, 1)
    target = jnp.broadcast_to(target, pred.shape)

    # Targets are binary in this loss (`target == 1` selection); stream them as
    # int8 to cut HBM traffic (1 B/elem vs 4 B/elem).
    # TODO(synk): add a float target path if soft labels are ever needed.
    target = target.astype(jnp.int8)

    total = pred.size
    rows = pl.cdiv(total, _LANES)
    rows = _round_up(rows, _ROW_ALIGN)
    tm = min(_TM_MAX, rows)
    rows = _round_up(rows, tm)
    padded_total = rows * _LANES

    pred_flat = pred.reshape(-1)
    tgt_flat = target.reshape(-1)
    pad_n = padded_total - total
    if pad_n:
        # Pad logits with a large negative value and targets with 0 so padded
        # elements contribute exactly zero loss (no in-kernel mask required).
        pred_flat = jnp.pad(pred_flat, (0, pad_n), constant_values=-100.0)
        tgt_flat = jnp.pad(tgt_flat, (0, pad_n), constant_values=0)

    pred2 = pred_flat.reshape(rows, _LANES)
    tgt2 = tgt_flat.reshape(rows, _LANES)

    num_blocks = rows // tm
    kernel = functools.partial(_focal_loss_kernel,
                               gamma=float(gamma), alpha=float(alpha))

    partials = pl.pallas_call(
        kernel,
        out_shape=jax.ShapeDtypeStruct((num_blocks * _SUBLANES, _LANES), jnp.float32),
        grid=(num_blocks,),
        in_specs=[
            pl.BlockSpec((tm, _LANES), lambda i: (i, 0)),
            pl.BlockSpec((tm, _LANES), lambda i: (i, 0)),
        ],
        out_specs=pl.BlockSpec((_SUBLANES, _LANES), lambda i: (i, 0)),
        compiler_params=pltpu.CompilerParams(
            dimension_semantics=("parallel",)),
    )(pred2, tgt2)

    s = jnp.sum(partials, dtype=jnp.float32)
    if reduction == "mean":
        loss = s / jnp.float32(total)
    elif reduction == "sum":
        loss = s
    else:
        # TODO(synk): reduction='none' (element-wise output) not implemented.
        raise NotImplementedError("only 'mean' and 'sum' reductions implemented")
    return jnp.float32(loss_weight) * loss


def _focal_loss_ref(pred, target, *, gamma=2.0, alpha=0.25, reduction="mean",
                    loss_weight=1.0):
    """Pure-JAX reference mirroring the PyTorch module (for validation)."""
    if pred.ndim != target.ndim:
        target = jnp.expand_dims(target, 1)
    x = pred.astype(jnp.float32)
    t = jnp.broadcast_to(target, pred.shape).astype(jnp.float32)
    sig = jax.nn.sigmoid(x)
    pt = jnp.where(t == 1.0, 1.0 - sig, sig)
    focal_w = (alpha * t + (1.0 - alpha) * (1.0 - t)) * jnp.power(pt, gamma)
    bce = jnp.maximum(x, 0.0) - x * t + jnp.log1p(jnp.exp(-jnp.abs(x)))
    loss = bce * focal_w
    if reduction == "mean":
        loss = loss.mean()
    elif reduction == "sum":
        loss = loss.sum()
    return loss_weight * loss


if __name__ == "__main__":
    key = jax.random.PRNGKey(0)
    k_pred, k_tgt = jax.random.split(key)

    # NCHW logits and binary targets (same layout as the PyTorch module).
    B, C, H, W = 2, 4, 16, 16
    pred = jax.random.normal(k_pred, (B, C, H, W), dtype=jnp.float32)
    target = jax.random.bernoulli(k_tgt, p=0.3, shape=(B, C, H, W)).astype(jnp.float32)

    out = focal_loss(pred, target, gamma=2.0, alpha=0.25,
                     reduction="mean", loss_weight=1.0)
    out = jax.block_until_ready(out)
    ref = _focal_loss_ref(pred, target, gamma=2.0, alpha=0.25,
                          reduction="mean", loss_weight=1.0)
    assert jnp.allclose(out, ref, rtol=1e-5, atol=1e-6), (out, ref)

    # Also exercise the NCHW-vs-NHW broadcast path and the 'sum' reduction.
    tgt_nhw = jax.random.bernoulli(k_tgt, p=0.3, shape=(B, H, W)).astype(jnp.float32)
    out2 = jax.block_until_ready(
        focal_loss(pred, tgt_nhw, gamma=2.0, alpha=0.25,
                   reduction="sum", loss_weight=0.5))
    ref2 = _focal_loss_ref(pred, tgt_nhw, gamma=2.0, alpha=0.25,
                           reduction="sum", loss_weight=0.5)
    assert jnp.allclose(out2, ref2, rtol=1e-4, atol=1e-4), (out2, ref2)

    print("KERNEL_OK")
</pallas_src>

<mosaic_0001>
module attributes {stable_mosaic.version = 11 : i64} {
  func.func @_focal_loss_kernel(%arg0: i32, %arg1: memref<32x128xf32, #tpu.memory_space<vmem>>, %arg2: memref<32x128xi8, #tpu.memory_space<vmem>>, %arg3: memref<8x128xf32, #tpu.memory_space<vmem>>) attributes {dimension_semantics = [#tpu.dimension_semantics<parallel>], iteration_bounds = array<i64: 1>, scalar_prefetch = 0 : i64, scratch_operands = 0 : i64, tpu.core_type = #tpu.core_type<tc>, window_params = [{transform_indices = @transform_0, window_bounds = array<i64: 32, 128>}, {transform_indices = @transform_1, window_bounds = array<i64: 32, 128>}, {transform_indices = @transform_2, window_bounds = array<i64: 8, 128>}]} {
    %c0 = arith.constant 0 : index
    %c0_0 = arith.constant 0 : index
    %0 = vector.load %arg1[%c0, %c0_0] : memref<32x128xf32, #tpu.memory_space<vmem>>, vector<32x128xf32>
    %c0_1 = arith.constant 0 : index
    %c0_2 = arith.constant 0 : index
    %1 = vector.load %arg2[%c0_1, %c0_2] : memref<32x128xi8, #tpu.memory_space<vmem>>, vector<32x128xi8>
    %2 = arith.sitofp %1 : vector<32x128xi8> to vector<32x128xf32>
    %3 = math.absf %0 : vector<32x128xf32>
    %cst = arith.constant 0.000000e+00 : f32
    %4 = vector.broadcast %cst : f32 to vector<32x128xf32>
    %5 = arith.subf %4, %3 : vector<32x128xf32>
    %6 = math.exp %5 : vector<32x128xf32>
    %cst_3 = arith.constant 1.000000e+00 : f32
    %7 = vector.broadcast %cst_3 : f32 to vector<32x128xf32>
    %8 = arith.addf %7, %6 : vector<32x128xf32>
    %cst_4 = arith.constant 1.000000e+00 : f32
    %9 = vector.broadcast %cst_4 : f32 to vector<32x128xf32>
    %10 = arith.divf %9, %8 : vector<32x128xf32>
    %cst_5 = arith.constant 0.000000e+00 : f32
    %11 = vector.broadcast %cst_5 : f32 to vector<32x128xf32>
    %12 = arith.cmpf oge, %0, %11 : vector<32x128xf32>
    %13 = arith.mulf %6, %10 : vector<32x128xf32>
    %14 = arith.select %12, %10, %13 : vector<32x128xi1>, vector<32x128xf32>
    %cst_6 = arith.constant 1.000000e+00 : f32
    %15 = vector.broadcast %cst_6 : f32 to vector<32x128xf32>
    %16 = arith.cmpf oeq, %2, %15 : vector<32x128xf32>
    %cst_7 = arith.constant 1.000000e+00 : f32
    %17 = vector.broadcast %cst_7 : f32 to vector<32x128xf32>
    %18 = arith.subf %17, %14 : vector<32x128xf32>
    %19 = arith.select %16, %18, %14 : vector<32x128xi1>, vector<32x128xf32>
    %20 = arith.mulf %19, %19 : vector<32x128xf32>
    %cst_8 = arith.constant 2.500000e-01 : f32
    %21 = vector.broadcast %cst_8 : f32 to vector<32x128xf32>
    %22 = arith.mulf %21, %2 : vector<32x128xf32>
    %cst_9 = arith.constant 1.000000e+00 : f32
    %23 = vector.broadcast %cst_9 : f32 to vector<32x128xf32>
    %24 = arith.subf %23, %2 : vector<32x128xf32>
    %cst_10 = arith.constant 7.500000e-01 : f32
    %25 = vector.broadcast %cst_10 : f32 to vector<32x128xf32>
    %26 = arith.mulf %25, %24 : vector<32x128xf32>
    %27 = arith.addf %22, %26 : vector<32x128xf32>
    %28 = arith.mulf %27, %20 : vector<32x128xf32>
    %cst_11 = arith.constant 0.000000e+00 : f32
    %29 = vector.broadcast %cst_11 : f32 to vector<32x128xf32>
    %30 = arith.maximumf %0, %29 : vector<32x128xf32>
    %31 = arith.mulf %0, %2 : vector<32x128xf32>
    %32 = arith.subf %30, %31 : vector<32x128xf32>
    %33 = math.log1p %6 : vector<32x128xf32>
    %34 = arith.addf %32, %33 : vector<32x128xf32>
    %35 = arith.mulf %34, %28 : vector<32x128xf32>
    %36 = vector.shape_cast %35 : vector<32x128xf32> to vector<4x8x128xf32>
    %cst_12 = arith.constant dense<0.000000e+00> : vector<8x128xf32>
    %37 = vector.multi_reduction <add>, %36, %cst_12 [0] : vector<4x8x128xf32> to vector<8x128xf32>
    %c0_13 = arith.constant 0 : index
    %c0_14 = arith.constant 0 : index
    %38 = vector.load %arg3[%c0_13, %c0_14] : memref<8x128xf32, #tpu.memory_space<vmem>>, vector<8x128xf32>
    tpu.vector_store %arg3[%c0_13, %c0_14], %37 {strides = array<i32>} : memref<8x128xf32, #tpu.memory_space<vmem>>, vector<8x128xf32>,
    return
  }
  func.func @transform_0(%arg0: i32) -> (i32, i32) {
    %c0_i32 = arith.constant 0 : i32
    %c0_i32_0 = arith.constant 0 : i32
    return %arg0, %c0_i32 : i32, i32
  }
  func.func @transform_1(%arg0: i32) -> (i32, i32) {
    %c0_i32 = arith.constant 0 : i32
    %c0_i32_0 = arith.constant 0 : i32
    return %arg0, %c0_i32 : i32, i32
  }
  func.func @transform_2(%arg0: i32) -> (i32, i32) {
    %c0_i32 = arith.constant 0 : i32
    %c0_i32_0 = arith.constant 0 : i32
    return %arg0, %c0_i32 : i32, i32
  }
}

</mosaic_0001>

<llo_original>
// kernel: tpu_custom_call.1
$region0: #{tpu_custom_call.1}
  #allocation0 [shape = 'u32[]', space=smem, size = 0x4, offset = 0x4, fixed_abs, tag = 'smem constant byte address 0x4 - core index']
  #allocation1 [shape = 'u32[144,128]{1,0:T(1,128)}', space=vmem, size = 0x12000, scoped, tag = 'internal scratch']
  %s0 = inlined_call_operand.hbm [shape: f32[32,128], index: 0, kind: input, shape index: {}]
  %s1 = inlined_call_operand.hbm [shape: s8[32,128], index: 1, kind: input, shape index: {}]
  %s2 = inlined_call_operand.hbm [shape: f32[8,128], index: 2, kind: output, shape index: {}]
  %s3 = sld [smem:[#allocation0]]
  $region26: #{tpu_custom_call.1} parent=0
    _
  %s5 = ssub.s32 1, %s3
  %s6 = scalar_select 0, %s5, %s3
  $region1: #{tpu_custom_call.1} parent=0
    #allocation2 [shape = 'u8[16384]{0}', space=vmem, size = 0x4000, scoped, tag = 'input window, operand 0, single buffered']
    #allocation3 [shape = 's32[1]{0}', space=sflag, size = 0x4, scoped, tag = 'scoped memory for tpu_custom_call.1']
    #allocation4 [shape = 's32[1]{0}', space=sflag, size = 0x4, scoped, tag = 'scoped memory for tpu_custom_call.1']
    #allocation5 [shape = 'u8[4096]{0}', space=vmem, size = 0x1000, scoped, tag = 'input window, operand 1, single buffered']
    #allocation6 [shape = 's32[1]{0}', space=sflag, size = 0x4, scoped, tag = 'scoped memory for tpu_custom_call.1']
    #allocation7 [shape = 'u8[4096]{0}', space=vmem, size = 0x1000, scoped, tag = 'output window, operand 0, single buffered']
    %7 = vsyncpa [#allocation3], 0
    %8 = vsyncpa [#allocation6], 0
    %9 = vsyncpa [#allocation4], 0
    // Predicated region
    $region2: #{tpu_custom_call.1} parent=1 // pred_check
      _
    $region3: #{tpu_custom_call.1} parent=1 // pred_check_branch
      %11 = sbr.rel (0) target = $region5
    $region4: #{tpu_custom_call.1} parent=1 // pred_region
      %s13 = ssub.s32 512, 512
      %14 = vsyncadd [#allocation3], %s13
      %s15 = sshll.u32 [#allocation2], 4
      %s16 = int_to_ptr.vmem [resolvable:$true] %s15
      %21 = dma.hbm_to_vmem [thread:$0]  %s0, 512, %s16, [#allocation3], 128, 128, 8
    $region5: #{tpu_custom_call.1} parent=1 // pred_fallthru
      _
    // Predicated region
    $region6: #{tpu_custom_call.1} parent=1 // pred_check
      _
    $region7: #{tpu_custom_call.1} parent=1 // pred_check_branch
      %23 = sbr.rel (0) target = $region9
    $region8: #{tpu_custom_call.1} parent=1 // pred_region
      %s25 = ssub.s32 128, 128
      %26 = vsyncadd [#allocation6], %s25
      %s28 = sshll.u32 [#allocation5], 4
      %s29 = int_to_ptr.vmem [resolvable:$true] %s28
      %31 = dma.hbm_to_vmem [thread:$0]  %s1, 128, %s29, [#allocation6]
    $region9: #{tpu_custom_call.1} parent=1 // pred_fallthru
      _
    // Predicated region
    $region10: #{tpu_custom_call.1} parent=1 // pred_check
      _
    $region11: #{tpu_custom_call.1} parent=1 // pred_check_branch
      %33 = sbr.rel (0) target = $region13
    $region12: #{tpu_custom_call.1} parent=1 // pred_region
      %34 = dma.done [#allocation3], 512
    $region13: #{tpu_custom_call.1} parent=1 // pred_fallthru
      _
    // Predicated region
    $region14: #{tpu_custom_call.1} parent=1 // pred_check
      _
    $region15: #{tpu_custom_call.1} parent=1 // pred_check_branch
      %36 = sbr.rel (0) target = $region17
    $region16: #{tpu_custom_call.1} parent=1 // pred_region
      %37 = dma.done [#allocation6], 128
    $region17: #{tpu_custom_call.1} parent=1 // pred_fallthru
      _
    %v38 = vld [vmem:[#allocation2] sm:$0xff]
    %v39 = vld [vmem:[#allocation2 + $0x8] sm:$0xff]
    %v40 = vld [vmem:[#allocation2 + $0x10] sm:$0xff]
    %v41 = vld [vmem:[#allocation2 + $0x18] sm:$0xff]
    %v42 = vld [vmem:[#allocation5] sm:$0xff]
    %v43 = vunpack.c.0.s8 %v42
    %v44 = vunpack.c.1.s8 %v42
    %v45 = vunpack.c.2.s8 %v42
    %v46 = vunpack.c.3.s8 %v42
    %v47 = vcvt.s32.f32 %v43
    %v48 = vcvt.s32.f32 %v44
    %v49 = vcvt.s32.f32 %v45
    %v50 = vcvt.s32.f32 %v46
    %v51 = vand.u32 2147483647, %v38
    %v52 = vand.u32 2147483647, %v39
    %v53 = vand.u32 2147483647, %v40
    %v54 = vand.u32 2147483647, %v41
    %v55 = vsub.f32 0.0, %v51
    %v56 = vsub.f32 0.0, %v52
    %v57 = vsub.f32 0.0, %v53
    %v58 = vsub.f32 0.0, %v54
    %v59 = vmul.f32 %v55, 1.442695
    %v60 = vpow.pop %v59
    %v61 = vmul.f32 %v56, 1.442695
    %v62 = vpow.pop %v61
    %v63 = vmul.f32 %v57, 1.442695
    %v64 = vpow.pop %v63
    %v65 = vmul.f32 %v58, 1.442695
    %v66 = vpow.pop %v65
    %v67 = vadd.f32 %v60, 1.0
    %v68 = vadd.f32 %v62, 1.0
    %v69 = vadd.f32 %v64, 1.0
    %v70 = vadd.f32 %v66, 1.0
    %v71 = vrcp.pop %v67
    %v72 = vmul.f32 1.0, %v71
    %v73 = vrcp.pop %v68
    %v74 = vmul.f32 1.0, %v73
    %v75 = vrcp.pop %v69
    %v76 = vmul.f32 1.0, %v75
    %v77 = vrcp.pop %v70
    %v78 = vmul.f32 1.0, %v77
    %vm79 = vcmp.ge.f32.partialorder %v38, 0.0
    %vm80 = vcmp.ge.f32.partialorder %v39, 0.0
    %vm81 = vcmp.ge.f32.partialorder %v40, 0.0
    %vm82 = vcmp.ge.f32.partialorder %v41, 0.0
    %v83 = vmul.f32 %v60, %v72
    %v84 = vmul.f32 %v62, %v74
    %v85 = vmul.f32 %v64, %v76
    %v86 = vmul.f32 %v66, %v78
    %v87 = vsel %vm79, %v72, %v83
    %v88 = vsel %vm80, %v74, %v84
    %v89 = vsel %vm81, %v76, %v85
    %v90 = vsel %vm82, %v78, %v86
    %vm91 = vcmp.eq.f32.partialorder %v47, 1.0
    %vm92 = vcmp.eq.f32.partialorder %v48, 1.0
    %vm93 = vcmp.eq.f32.partialorder %v49, 1.0
    %vm94 = vcmp.eq.f32.partialorder %v50, 1.0
    %v95 = vsub.f32 1.0, %v87
    %v96 = vsub.f32 1.0, %v88
    %v97 = vsub.f32 1.0, %v89
    %v98 = vsub.f32 1.0, %v90
    %v99 = vsel %vm91, %v95, %v87
    %v100 = vsel %vm92, %v96, %v88
    %v101 = vsel %vm93, %v97, %v89
    %v102 = vsel %vm94, %v98, %v90
    %v103 = vmul.f32 %v99, %v99
    %v104 = vmul.f32 %v100, %v100
    %v105 = vmul.f32 %v101, %v101
    %v106 = vmul.f32 %v102, %v102
    %v107 = vmul.f32 %v47, 0.25
    %v108 = vmul.f32 %v48, 0.25
    %v109 = vmul.f32 %v49, 0.25
    %v110 = vmul.f32 %v50, 0.25
    %v111 = vsub.f32 1.0, %v47
    %v112 = vsub.f32 1.0, %v48
    %v113 = vsub.f32 1.0, %v49
    %v114 = vsub.f32 1.0, %v50
    %v115 = vmul.f32 %v111, 0.75
    %v116 = vmul.f32 %v112, 0.75
    %v117 = vmul.f32 %v113, 0.75
    %v118 = vmul.f32 %v114, 0.75
    %v119 = vadd.f32 %v107, %v115
    %v120 = vadd.f32 %v108, %v116
    %v121 = vadd.f32 %v109, %v117
    %v122 = vadd.f32 %v110, %v118
    %v123 = vmul.f32 %v119, %v103
    %v124 = vmul.f32 %v120, %v104
    %v125 = vmul.f32 %v121, %v105
    %v126 = vmul.f32 %v122, %v106
    %v127 = vmax.f32 %v38, 0.0
    %v128 = vmax.f32 %v39, 0.0
    %v129 = vmax.f32 %v40, 0.0
    %v130 = vmax.f32 %v41, 0.0
    %v131 = vmul.f32 %v38, %v47
    %v132 = vmul.f32 %v39, %v48
    %v133 = vmul.f32 %v40, %v49
    %v134 = vmul.f32 %v41, %v50
    %v135 = vsub.f32 %v127, %v131
    %v136 = vsub.f32 %v128, %v132
    %v137 = vsub.f32 %v129, %v133
    %v138 = vsub.f32 %v130, %v134
    %v139 = vadd.f32 %v60, 1.0
    %v140 = vlog2.pop %v139
    %v141 = vmul.f32 %v140, 0.6931472
    %v142 = vmul.f32 -0.5, %v60
    %v143 = vadd.f32 %v142, 1.0
    %v144 = vmul.f32 %v143, %v60
    %v145 = vand.u32 2147483647, %v60
    %vm146 = vcmp.lt.f32.partialorder %v145, 0.0004427343
    %v147 = vsel %vm146, %v144, %v141
    %v148 = vadd.f32 %v62, 1.0
    %v149 = vlog2.pop %v148
    %v150 = vmul.f32 %v149, 0.6931472
    %v151 = vmul.f32 -0.5, %v62
    %v152 = vadd.f32 %v151, 1.0
    %v153 = vmul.f32 %v152, %v62
    %v154 = vand.u32 2147483647, %v62
    %vm155 = vcmp.lt.f32.partialorder %v154, 0.0004427343
    %v156 = vsel %vm155, %v153, %v150
    %v157 = vadd.f32 %v64, 1.0
    %v158 = vlog2.pop %v157
    %v159 = vmul.f32 %v158, 0.6931472
    %v160 = vmul.f32 -0.5, %v64
    %v161 = vadd.f32 %v160, 1.0
    %v162 = vmul.f32 %v161, %v64
    %v163 = vand.u32 2147483647, %v64
    %vm164 = vcmp.lt.f32.partialorder %v163, 0.0004427343
    %v165 = vsel %vm164, %v162, %v159
    %v166 = vadd.f32 %v66, 1.0
    %v167 = vlog2.pop %v166
    %v168 = vmul.f32 %v167, 0.6931472
    %v169 = vmul.f32 -0.5, %v66
    %v170 = vadd.f32 %v169, 1.0
    %v171 = vmul.f32 %v170, %v66
    %v172 = vand.u32 2147483647, %v66
    %vm173 = vcmp.lt.f32.partialorder %v172, 0.0004427343
    %v174 = vsel %vm173, %v171, %v168
    %v175 = vadd.f32 %v135, %v147
    %v176 = vadd.f32 %v136, %v156
    %v177 = vadd.f32 %v137, %v165
    %v178 = vadd.f32 %v138, %v174
    %v179 = vmul.f32 %v175, %v123
    %v180 = vmul.f32 %v176, %v124
    %v181 = vmul.f32 %v177, %v125
    %v182 = vmul.f32 %v178, %v126
    %v183 = vadd.f32 %v179, %v180
    %v184 = vadd.f32 %v183, %v181
    %v185 = vadd.f32 %v184, %v182
    %186 = vst [vmem:[#allocation7] sm:$0xff] %v185
    // Predicated region
    $region18: #{tpu_custom_call.1} parent=1 // pred_check
      _
    $region19: #{tpu_custom_call.1} parent=1 // pred_check_branch
      %188 = sbr.rel (0) target = $region21
    $region20: #{tpu_custom_call.1} parent=1 // pred_region
      %s190 = ssub.s32 128, 128
      %191 = vsyncadd [#allocation4], %s190
      %s193 = sshll.u32 [#allocation7], 4
      %s194 = int_to_ptr.vmem [resolvable:$true] %s193
      %196 = dma.vmem_to_hbm [thread:$0]  %s194, 128, %s2, [#allocation4]
    $region21: #{tpu_custom_call.1} parent=1 // pred_fallthru
      _
    // Predicated region
    $region22: #{tpu_custom_call.1} parent=1 // pred_check
      _
    $region23: #{tpu_custom_call.1} parent=1 // pred_check_branch
      %198 = sbr.rel (0) target = $region25
    $region24: #{tpu_custom_call.1} parent=1 // pred_region
      %199 = dma.done [#allocation4], 128
    $region25: #{tpu_custom_call.1} parent=1 // pred_fallthru
      _
    %200 = vsyncpa [#allocation3], 1
    %201 = vsyncpa [#allocation6], 1
    %202 = vsyncpa [#allocation4], 1

</llo_original>
